<compile_context>
chip_gen: v6e
topology: v6e:2x2x1
jax: 0.10.0
libtpu: 0.0.40
codegen_flags: <defaults>
</compile_context>

<pallas_src>
import jax
import jax.numpy as jnp
from jax.experimental import pallas as pl
from jax.experimental.pallas import tpu as pltpu

_EPS = 1e-5  # PyTorch BatchNorm2d default
_VMEM_LIMIT = 32 * 1024 * 1024


def _pick_hw_tile(hw, c, itemsize, budget_bytes=2 * 1024 * 1024):
    """Largest multiple of 128 that exactly divides hw and keeps one
    (1, c, tile) block within the byte budget; fall back to full extent."""
    if hw % 128 != 0:
        return hw  # full-extent last dim is always a legal block
    best = None
    t = 128
    while t <= hw:
        if hw % t == 0 and c * t * itemsize <= budget_bytes:
            best = t
        t += 128
    return best if best is not None else 128


def _stats_kernel(x_ref, sum_ref, ssq_ref):
    """Pass 1: accumulate per-channel sum and sum-of-squares.

    x_ref:   (1, C, hw_tile) in the input dtype
    sum_ref: (1, C) f32 accumulator (revisited across the whole grid)
    ssq_ref: (1, C) f32 accumulator
    """
    @pl.when((pl.program_id(0) == 0) & (pl.program_id(1) == 0))
    def _():
        sum_ref[...] = jnp.zeros_like(sum_ref)
        ssq_ref[...] = jnp.zeros_like(ssq_ref)

    x = x_ref[...].astype(jnp.float32)          # (1, C, hw_tile)
    sum_ref[...] += jnp.sum(x, axis=2)          # (1, C)
    ssq_ref[...] += jnp.sum(x * x, axis=2)      # (1, C)


def _norm_kernel(x_ref, scale_ref, shift_ref, o_ref):
    """Pass 2: fused y = max(x * scale + shift, 0) per channel.

    x_ref/o_ref: (1, C, hw_tile); scale_ref/shift_ref: (C, 1) f32, resident.
    """
    x = x_ref[...].astype(jnp.float32)          # (1, C, hw_tile)
    scale = scale_ref[...][None]                # (1, C, 1)
    shift = shift_ref[...][None]                # (1, C, 1)
    y = jnp.maximum(x * scale + shift, 0.0)
    o_ref[...] = y.astype(o_ref.dtype)


def post_activation(x_nchw, gamma, beta, *, eps=_EPS):
    """BatchNorm2d (training-mode batch stats) + ReLU. x_nchw: (N, C, H, W)."""
    n, c, h, w = x_nchw.shape
    hw = h * w
    x3d = x_nchw.reshape(n, c, hw)              # free reshape of NCHW
    itemsize = jnp.dtype(x_nchw.dtype).itemsize
    hw_tile = _pick_hw_tile(hw, c, itemsize)
    n_hw_tiles = hw // hw_tile

    # ---- Pass 1: per-channel sum / sum-of-squares --------------------------
    sums, ssqs = pl.pallas_call(
        _stats_kernel,
        out_shape=(jax.ShapeDtypeStruct((1, c), jnp.float32),
                   jax.ShapeDtypeStruct((1, c), jnp.float32)),
        grid=(n, n_hw_tiles),
        in_specs=[pl.BlockSpec((1, c, hw_tile), lambda i, j: (i, 0, j))],
        out_specs=(pl.BlockSpec((1, c), lambda i, j: (0, 0)),
                   pl.BlockSpec((1, c), lambda i, j: (0, 0))),
        compiler_params=pltpu.CompilerParams(
            dimension_semantics=("arbitrary", "arbitrary"),
            vmem_limit_bytes=_VMEM_LIMIT),
    )(x3d)

    # ---- Tiny (C,)-sized epilogue: scale/shift ------------------------------
    count = jnp.float32(n * hw)
    mean = sums / count                                      # (1, C)
    var = jnp.maximum(ssqs / count - mean * mean, 0.0)       # biased variance
    inv_std = jax.lax.rsqrt(var + jnp.float32(eps))
    scale = gamma.reshape(1, c).astype(jnp.float32) * inv_std
    shift = beta.reshape(1, c).astype(jnp.float32) - mean * scale
    scale_col = scale.reshape(c, 1)
    shift_col = shift.reshape(c, 1)

    # ---- Pass 2: normalize + affine + ReLU ----------------------------------
    out3d = pl.pallas_call(
        _norm_kernel,
        out_shape=jax.ShapeDtypeStruct((n, c, hw), x_nchw.dtype),
        grid=(n, n_hw_tiles),
        in_specs=[pl.BlockSpec((1, c, hw_tile), lambda i, j: (i, 0, j)),
                  pl.BlockSpec((c, 1), lambda i, j: (0, 0)),
                  pl.BlockSpec((c, 1), lambda i, j: (0, 0))],
        out_specs=pl.BlockSpec((1, c, hw_tile), lambda i, j: (i, 0, j)),
        compiler_params=pltpu.CompilerParams(
            dimension_semantics=("parallel", "parallel"),
            vmem_limit_bytes=_VMEM_LIMIT),
    )(x3d, scale_col, shift_col)

    return out3d.reshape(n, c, h, w)


if __name__ == "__main__":
    key = jax.random.PRNGKey(0)
    kx, kg, kb = jax.random.split(key, 3)

    N, C, H, W = 2, 4, 16, 16
    x = jax.random.normal(kx, (N, C, H, W), dtype=jnp.float32)

    # gamma=1, beta=0 is the PyTorch default init; perturb so the affine path
    # is actually exercised.
    gamma = 1.0 + 0.1 * jax.random.normal(kg, (C,), dtype=jnp.float32)
    beta = 0.1 * jax.random.normal(kb, (C,), dtype=jnp.float32)

    out = post_activation(x, gamma, beta)
    out = jax.block_until_ready(out)

    # Pure-JAX reference (training-mode BatchNorm2d + ReLU).
    mean = jnp.mean(x, axis=(0, 2, 3), keepdims=True)
    var = jnp.mean((x - mean) ** 2, axis=(0, 2, 3), keepdims=True)
    ref = (x - mean) / jnp.sqrt(var + _EPS)
    ref = ref * gamma.reshape(1, C, 1, 1) + beta.reshape(1, C, 1, 1)
    ref = jnp.maximum(ref, 0.0)

    assert out.shape == (N, C, H, W)
    assert jnp.allclose(out, ref, atol=1e-4, rtol=1e-4), (
        float(jnp.max(jnp.abs(out - ref))))
    print("KERNEL_OK")
</pallas_src>

<mosaic_0001>
module attributes {stable_mosaic.version = 11 : i64} {
  func.func @_stats_kernel(%arg0: i32, %arg1: i32, %arg2: memref<1x4x256xf32, #tpu.memory_space<vmem>>, %arg3: memref<1x4xf32, #tpu.memory_space<vmem>>, %arg4: memref<1x4xf32, #tpu.memory_space<vmem>>) attributes {dimension_semantics = [#tpu.dimension_semantics<arbitrary>, #tpu.dimension_semantics<arbitrary>], iteration_bounds = array<i64: 2, 1>, scalar_prefetch = 0 : i64, scratch_operands = 0 : i64, tpu.core_type = #tpu.core_type<tc>, window_params = [{transform_indices = @transform_0, window_bounds = array<i64: 1, 4, 256>}, {pipeline_mode = #tpu.pipeline_mode<synchronous>, transform_indices = @transform_1, window_bounds = array<i64: 1, 4>}, {pipeline_mode = #tpu.pipeline_mode<synchronous>, transform_indices = @transform_2, window_bounds = array<i64: 1, 4>}]} {
    %c0_i32 = arith.constant 0 : i32
    %0 = arith.cmpi eq, %arg0, %c0_i32 : i32
    %c0_i32_0 = arith.constant 0 : i32
    %1 = arith.cmpi eq, %arg1, %c0_i32_0 : i32
    %2 = arith.andi %0, %1 : i1
    %3 = arith.extui %2 : i1 to i32
    %c0_i32_1 = arith.constant 0 : i32
    %4 = arith.cmpi ne, %3, %c0_i32_1 : i32
    scf.if %4 {
      %cst_13 = arith.constant 0.000000e+00 : f32
      %15 = vector.broadcast %cst_13 : f32 to vector<1x4xf32>
      %c0_14 = arith.constant 0 : index
      %c0_15 = arith.constant 0 : index
      %16 = vector.load %arg3[%c0_14, %c0_15] : memref<1x4xf32, #tpu.memory_space<vmem>>, vector<1x4xf32>
      tpu.vector_store %arg3[%c0_14, %c0_15], %15 {strides = array<i32>} : memref<1x4xf32, #tpu.memory_space<vmem>>, vector<1x4xf32>,
      %cst_16 = arith.constant 0.000000e+00 : f32
      %17 = vector.broadcast %cst_16 : f32 to vector<1x4xf32>
      %c0_17 = arith.constant 0 : index
      %c0_18 = arith.constant 0 : index
      %18 = vector.load %arg4[%c0_17, %c0_18] : memref<1x4xf32, #tpu.memory_space<vmem>>, vector<1x4xf32>
      tpu.vector_store %arg4[%c0_17, %c0_18], %17 {strides = array<i32>} : memref<1x4xf32, #tpu.memory_space<vmem>>, vector<1x4xf32>,
    } else {
    }
    %c0 = arith.constant 0 : index
    %c0_2 = arith.constant 0 : index
    %c0_3 = arith.constant 0 : index
    %5 = vector.load %arg2[%c0, %c0_2, %c0_3] : memref<1x4x256xf32, #tpu.memory_space<vmem>>, vector<1x4x256xf32>
    %c0_4 = arith.constant 0 : index
    %c0_5 = arith.constant 0 : index
    %6 = vector.load %arg3[%c0_4, %c0_5] : memref<1x4xf32, #tpu.memory_space<vmem>>, vector<1x4xf32>
    %cst = arith.constant dense<0.000000e+00> : vector<1x4xf32>
    %7 = vector.multi_reduction <add>, %5, %cst [2] : vector<1x4x256xf32> to vector<1x4xf32>
    %8 = arith.addf %6, %7 : vector<1x4xf32>
    %c0_6 = arith.constant 0 : index
    %c0_7 = arith.constant 0 : index
    %9 = vector.load %arg3[%c0_6, %c0_7] : memref<1x4xf32, #tpu.memory_space<vmem>>, vector<1x4xf32>
    tpu.vector_store %arg3[%c0_6, %c0_7], %8 {strides = array<i32>} : memref<1x4xf32, #tpu.memory_space<vmem>>, vector<1x4xf32>,
    %c0_8 = arith.constant 0 : index
    %c0_9 = arith.constant 0 : index
    %10 = vector.load %arg4[%c0_8, %c0_9] : memref<1x4xf32, #tpu.memory_space<vmem>>, vector<1x4xf32>
    %11 = arith.mulf %5, %5 : vector<1x4x256xf32>
    %cst_10 = arith.constant dense<0.000000e+00> : vector<1x4xf32>
    %12 = vector.multi_reduction <add>, %11, %cst_10 [2] : vector<1x4x256xf32> to vector<1x4xf32>
    %13 = arith.addf %10, %12 : vector<1x4xf32>
    %c0_11 = arith.constant 0 : index
    %c0_12 = arith.constant 0 : index
    %14 = vector.load %arg4[%c0_11, %c0_12] : memref<1x4xf32, #tpu.memory_space<vmem>>, vector<1x4xf32>
    tpu.vector_store %arg4[%c0_11, %c0_12], %13 {strides = array<i32>} : memref<1x4xf32, #tpu.memory_space<vmem>>, vector<1x4xf32>,
    return
  }
  func.func @transform_0(%arg0: i32, %arg1: i32) -> (i32, i32, i32) {
    %c0_i32 = arith.constant 0 : i32
    %c0_i32_0 = arith.constant 0 : i32
    return %arg0, %c0_i32, %arg1 : i32, i32, i32
  }
  func.func @transform_1(%arg0: i32, %arg1: i32) -> (i32, i32) {
    %c0_i32 = arith.constant 0 : i32
    %c0_i32_0 = arith.constant 0 : i32
    %c0_i32_1 = arith.constant 0 : i32
    return %c0_i32, %c0_i32_0 : i32, i32
  }
  func.func @transform_2(%arg0: i32, %arg1: i32) -> (i32, i32) {
    %c0_i32 = arith.constant 0 : i32
    %c0_i32_0 = arith.constant 0 : i32
    %c0_i32_1 = arith.constant 0 : i32
    return %c0_i32, %c0_i32_0 : i32, i32
  }
}

</mosaic_0001>

<llo_original>
// kernel: tpu_custom_call.1
$region0: #{tpu_custom_call.1}
  #allocation0 [shape = 'u32[]', space=smem, size = 0x4, offset = 0x4, fixed_abs, tag = 'smem constant byte address 0x4 - core index']
  #allocation1 [shape = 'u32[144,128]{1,0:T(1,128)}', space=vmem, size = 0x12000, scoped, tag = 'internal scratch']
  %s0 = inlined_call_operand.hbm [shape: f32[2,4,256], index: 0, kind: input, shape index: {}]
  %s1 = inlined_call_operand.hbm [shape: f32[1,4], index: 1, kind: output, shape index: {0}]
  %s2 = inlined_call_operand.hbm [shape: f32[1,4], index: 2, kind: output, shape index: {1}]
  %3 = xla_tuple %s1, %s2
  %s4 = sld [smem:[#allocation0]]
  $region53: #{tpu_custom_call.1} parent=0
    _
  %s6 = ssub.s32 1, %s4
  %s7 = scalar_select 0, %s6, %s4
  $region1: #{tpu_custom_call.1} parent=0
    #allocation2 [shape = 'u8[8192]{0}', space=vmem, size = 0x2000, scoped, tag = 'input window, operand 0']
    #allocation3 [shape = 's32[2]{0}', space=sflag, size = 0x8, scoped, tag = 'scoped memory for tpu_custom_call.1']
    #allocation4 [shape = 's32[2]{0}', space=sflag, size = 0x8, scoped, tag = 'scoped memory for tpu_custom_call.1']
    #allocation5 [shape = 'u8[512]{0}', space=vmem, size = 0x400, scoped, tag = 'output window, operand 0, single buffered']
    #allocation6 [shape = 'u8[512]{0}', space=vmem, size = 0x400, scoped, tag = 'output window, operand 1, single buffered']
    #allocation7 [shape = 's32[1]{0}', space=sflag, size = 0x4, scoped, tag = 'scoped memory for tpu_custom_call.1']
    %8 = vsyncpa [#allocation3], 0
    %s9 = scalar_lea.sflag [#allocation3], 1
    %10 = vsyncpa %s9, 0
    %11 = vsyncpa [#allocation4], 0
    %12 = vsyncpa [#allocation7], 0
    loop: start=0, step=1, limit=4
    $region2: #{tpu_custom_call.1} parent=1 // loop_pre_header
      _
    $region3: #{tpu_custom_call.1} parent=1 // loop_header
      %s14 = sphi 0, %s18
      %p15 = scmp.ge.s32.totalorder %s14, 4
      %s21 = sphi 0, %s33
      %s22 = sphi 0, %s29
      %s23 = sphi 0, %s21
      %s24 = sphi 0, %s22
      %s25 = sphi 0, %s23
      %s26 = sphi 0, %s24
      %s38 = sphi 0, %s40
      %s41 = sphi 0, %s38
      %s42 = sphi 0, %s41
      %s58 = sphi 0, %s42
      %s62 = sphi 0, %s62
      %s64 = sphi 0, %s62
      %s65 = sphi 0, %s64
      %s79 = sphi 0, %s65
      %s83 = sphi 0, %s83
      %s85 = sphi 0, %s83
      %s86 = sphi 0, %s85
      %s100 = sphi 0, %s86
    $region4: #{tpu_custom_call.1} parent=1 // loop_header_branch
      %17 = sbr.rel (%p15) target = $region8
    $region5: #{tpu_custom_call.1} parent=1 // loop_body
      %s19 = ssub.s32 %s14, 1
      %s20 = ssub.s32 %s14, 2
      %s27 = sadd.s32 1, %s22
      %p28 = scmp.ge.s32.totalorder %s27, 1
      %s29 = scalar_select %p28, 0, %s27
      %s30 = sadd.s32 1, %s21
      %s31 = scalar_select %p28, %s30, %s21
      %p32 = scmp.ge.s32.totalorder %s31, 2
      %s33 = scalar_select %p32, 0, %s31
      %s34 = ssub.s32 %s21, %s33
      %s35 = ssub.s32 %s22, %s29
      %s36 = sor.u32 %s34, %s35
      %p37 = scmp.eq.s32.totalorder %s36, 0
      %s39 = sadd.s32 %s38, 1
      %s40 = scalar_select %p37, %s38, %s39
      %p43 = pneg %p37
      %p44 = scmp.eq.s32.totalorder %s14, 1
      %p45 = por %p43, %p44
      %p46 = scmp.ne.s32.totalorder %s38, %s41
      %p47 = scmp.eq.s32.totalorder %s14, 0
      %p48 = por %p46, %p47
      %p49 = scmp.ne.s32.totalorder %s38, %s41
      %p50 = scmp.eq.s32.totalorder %s19, 1
      %p51 = por %p49, %p50
      %p52 = scmp.ne.s32.totalorder %s41, %s42
      %p53 = scmp.eq.s32.totalorder %s19, 0
      %p54 = por %p52, %p53
      %p55 = scmp.ne.s32.totalorder %s41, %s42
      %p56 = scmp.eq.s32.totalorder %s20, 1
      %p57 = por %p55, %p56
      %p59 = scmp.ne.s32.totalorder %s42, %s58
      %p60 = scmp.eq.s32.totalorder %s20, 0
      %p61 = por %p59, %p60
      %s63 = sadd.s32 %s62, 1
      %p66 = scmp.eq.s32.totalorder %s14, 1
      %p67 = scmp.ne.s32.totalorder %s62, %s64
      %p68 = scmp.eq.s32.totalorder %s14, 0
      %p69 = por %p67, %p68
      %p70 = scmp.ne.s32.totalorder %s62, %s64
      %p71 = scmp.eq.s32.totalorder %s19, 1
      %p72 = por %p70, %p71
      %p73 = scmp.ne.s32.totalorder %s64, %s65
      %p74 = scmp.eq.s32.totalorder %s19, 0
      %p75 = por %p73, %p74
      %p76 = scmp.ne.s32.totalorder %s64, %s65
      %p77 = scmp.eq.s32.totalorder %s20, 1
      %p78 = por %p76, %p77
      %p80 = scmp.ne.s32.totalorder %s65, %s79
      %p81 = scmp.eq.s32.totalorder %s20, 0
      %p82 = por %p80, %p81
      %s84 = sadd.s32 %s83, 1
      %p87 = scmp.eq.s32.totalorder %s14, 1
      %p88 = scmp.ne.s32.totalorder %s83, %s85
      %p89 = scmp.eq.s32.totalorder %s14, 0
      %p90 = por %p88, %p89
      %p91 = scmp.ne.s32.totalorder %s83, %s85
      %p92 = scmp.eq.s32.totalorder %s19, 1
      %p93 = por %p91, %p92
      %p94 = scmp.ne.s32.totalorder %s85, %s86
      %p95 = scmp.eq.s32.totalorder %s19, 0
      %p96 = por %p94, %p95
      %p97 = scmp.ne.s32.totalorder %s85, %s86
      %p98 = scmp.eq.s32.totalorder %s20, 1
      %p99 = por %p97, %p98
      %p101 = scmp.ne.s32.totalorder %s86, %s100
      %p102 = scmp.eq.s32.totalorder %s20, 0
      %p103 = por %p101, %p102
      %p104 = scmp.le.s32.totalorder 1, %s14
      %p105 = scmp.lt.s32.totalorder %s14, 3
      %p106 = pnand %p104, %p105
      %p107 = pneg %p106
      // Predicated region
      $region9: #{tpu_custom_call.1} parent=5 // pred_check
        _
      $region10: #{tpu_custom_call.1} parent=5 // pred_check_branch
        %109 = sbr.rel (%p106) target = $region12
      $region11: #{tpu_custom_call.1} parent=5 // pred_region
        %s110 = ssub.s32 %s14, 1
      $region12: #{tpu_custom_call.1} parent=5 // pred_fallthru
        _
      %p111 = scmp.lt.s32.totalorder %s14, 2
      // Predicated region
      $region13: #{tpu_custom_call.1} parent=5 // pred_check
        %p112 = pneg %p111
      $region14: #{tpu_custom_call.1} parent=5 // pred_check_branch
        %114 = sbr.rel (%p112) target = $region16
      $region15: #{tpu_custom_call.1} parent=5 // pred_region
        // Predicated region
        $region17: #{tpu_custom_call.1} parent=15 // pred_check
          %p115 = pneg %p48
        $region18: #{tpu_custom_call.1} parent=15 // pred_check_branch
          %117 = sbr.rel (%p115) target = $region20
        $region19: #{tpu_custom_call.1} parent=15 // pred_region
          %s118 = sand.u32 %s38, 1
          %s119 = scalar_lea.sflag [#allocation3], %s118
          %s120 = sand.u32 %s38, 1
          %s121 = smul.addr %s120, 8
          %s122 = scalar_lea.vmem [#allocation2], %s121
          %s123 = smul.u32 2, %s22
          %s125 = ssub.s32 128, 128
          %126 = vsyncadd %s119, %s125
          %s127 = smul.addr %s21, 2
          %s128 = sadd.s32 %s123, %s127
          %s129 = smul.addr %s128, 64
          %s130 = scalar_lea.hbm %s0, %s129
          %s132 = sshll.u32 %s122, 4
          %s133 = int_to_ptr.vmem [resolvable:$true] %s132
          %135 = dma.hbm_to_vmem [thread:$0]  %s130, 128, %s133, %s119
        $region20: #{tpu_custom_call.1} parent=15 // pred_fallthru
          _
      $region16: #{tpu_custom_call.1} parent=5 // pred_fallthru
        _
      %p136 = scmp.le.s32.totalorder 1, %s14
      %p137 = scmp.lt.s32.totalorder %s14, 3
      %p138 = pnand %p136, %p137
      %p139 = pneg %p138
      // Predicated region
      $region21: #{tpu_custom_call.1} parent=5 // pred_check
        _
      $region22: #{tpu_custom_call.1} parent=5 // pred_check_branch
        %141 = sbr.rel (%p138) target = $region24
      $region23: #{tpu_custom_call.1} parent=5 // pred_region
        %s142 = ssub.s32 %s14, 1
        %s143 = sand.u32 %s41, 1
        %s144 = scalar_lea.sflag [#allocation3], %s143
        %s145 = sand.u32 %s41, 1
        %s146 = smul.addr %s145, 8
        %s147 = scalar_lea.vmem [#allocation2], %s146
        // Predicated region
        $region25: #{tpu_custom_call.1} parent=23 // pred_check
          %p148 = pneg %p54
        $region26: #{tpu_custom_call.1} parent=23 // pred_check_branch
          %150 = sbr.rel (%p148) target = $region28
        $region27: #{tpu_custom_call.1} parent=23 // pred_region
          %151 = dma.done %s144, 128
        $region28: #{tpu_custom_call.1} parent=23 // pred_fallthru
          _
        %s152 = sand.u32 %s41, 1
        %s153 = scalar_lea.sflag [#allocation3], %s152
        %s154 = sand.u32 %s41, 1
        %s155 = smul.addr %s154, 8
        %s156 = scalar_lea.vmem [#allocation2], %s155
        %p157 = pneg %p54
        %p158 = pneg %p51
        %p159 = pneg %p75
        %p160 = pneg %p72
        %p161 = pneg %p96
        %p162 = pneg %p93
        %s163 = smul.u32 2, %s24
        %p164 = scmp.eq.s32.totalorder %s23, 0
        %p165 = scmp.eq.s32.totalorder %s24, 0
        %p166 = pnand %p164, %p165
        %p167 = pneg %p166
        // Predicated region
        $region29: #{tpu_custom_call.1} parent=23 // pred_check
          _
        $region30: #{tpu_custom_call.1} parent=23 // pred_check_branch
          %169 = sbr.rel (%p166) target = $region32
        $region31: #{tpu_custom_call.1} parent=23 // pred_region
          %vm170 = vcmask 24576
          %171 = vst.msk [vmem:[#allocation5] sm:$0x1] %vm170, 0.0
          %172 = vst.msk [vmem:[#allocation6] sm:$0x1] %vm170, 0.0
        $region32: #{tpu_custom_call.1} parent=23 // pred_fallthru
          _
        %v173 = vld [vmem:[%s147] sm:$0xff]
        %v174 = vld [vmem:[#allocation5] sm:$0x1]
        %v176 = vcombine.high %v173, %v173
        %vm178 = vcmask 1043456
        %v179 = vsel %vm178, %v173, 0.0
        %v180 = vsel %vm178, %v176, 0.0
        %v181 = vadd.f32 %v179, %v180
        %182 = vadd.xlane.f32.xlu0 %v181
        %v183 = vpop.xlane.xlu0 %182
        %v185 = vlaneseq
        %v186 = vshrl.u32 %v185, 7
        %v187 = vsub.s32 0, %v186
        %v188 = vrot.slane %v183, %v187
        %v189 = vlaneseq
        %v190 = vshrl.u32 %v189, 7
        %v191 = vsub.s32 1, %v190
        %v192 = vrot.slane %v183, %v191
        %v193 = vlaneseq
        %v194 = vshrl.u32 %v193, 7
        %v195 = vsub.s32 2, %v194
        %v196 = vrot.slane %v183, %v195
        %v197 = vlaneseq
        %v198 = vshrl.u32 %v197, 7
        %v199 = vsub.s32 3, %v198
        %v200 = vrot.slane %v183, %v199
        %v201 = vcombine.low %v188, %v192
        %v202 = vcombine.low %v196, %v200
        %v204 = vunpack.c.l.s4 1966171168
        %v205 = vunpack.c.0.s8 %v204
        %v206 = vlaneseq
        %v207 = vshrl.u32 %v206, 7
        %v208 = vsub.s32 %v205, %v207
        %v209 = vrot.slane %v201, %v208
        %v211 = vunpack.c.l.s4 1966171168
        %v212 = vunpack.c.0.s8 %v211
        %v213 = vlaneseq
        %v214 = vshrl.u32 %v213, 7
        %v215 = vsub.s32 %v212, %v214
        %v216 = vrot.slane %v202, %v215
        %v217 = vcombine.low %v209, %v216
        %v219 = vunpack.c.l.s4 1966171168
        %v220 = vunpack.c.0.s8 %v219
        %v221 = vlaneseq
        %v222 = vshrl.u32 %v221, 7
        %v223 = vsub.s32 %v220, %v222
        %v224 = vrot.slane %v217, %v223
        %225 = vset.pattern.permute.xlu0 0
        %226 = vperm.xlu0 %225, %v224
        %v227 = vpop.permute.xlu0 %226
        %v228 = vlaneseq
        %v229 = vand.u32 %v228, 127
        %v230 = vlaneseq
        %v231 = vshrl.u32 %v230, 7
        %v232 = vsub.s32 %v229, %v231
        %v233 = vrot.slane %v227, %v232
        %v235 = vunpack.c.l.s4 1966171168
        %v236 = vunpack.c.0.s8 %v235
        %v237 = vlaneseq
        %v238 = vshrl.u32 %v237, 7
        %v239 = vsub.s32 %v236, %v238
        %v240 = vrot.slane %v233, %v239
        %v242 = vunpack.c.l.s4 1966171168
        %v243 = vunpack.c.0.s8 %v242
        %v244 = vlaneseq
        %v245 = vshrl.u32 %v244, 7
        %v246 = vsub.s32 %v243, %v245
        %v247 = vrot.slane %v240, %v246
        %v249 = vadd.f32 %v174, %v247
        %vm250 = vcmask 24576
        %251 = vst.msk [vmem:[#allocation5] sm:$0x1] %vm250, %v249
        %v252 = vld [vmem:[#allocation6] sm:$0x1]
        %v253 = vmul.f32 %v173, %v173
        %v255 = vcombine.high %v253, %v253
        %v257 = vsel %vm178, %v253, 0.0
        %v258 = vsel %vm178, %v255, 0.0
        %v259 = vadd.f32 %v257, %v258
        %260 = vadd.xlane.f32.xlu0 %v259
        %v261 = vpop.xlane.xlu0 %260
        %v263 = vlaneseq
        %v264 = vshrl.u32 %v263, 7
        %v265 = vsub.s32 0, %v264
        %v266 = vrot.slane %v261, %v265
        %v267 = vlaneseq
        %v268 = vshrl.u32 %v267, 7
        %v269 = vsub.s32 1, %v268
        %v270 = vrot.slane %v261, %v269
        %v271 = vlaneseq
        %v272 = vshrl.u32 %v271, 7
        %v273 = vsub.s32 2, %v272
        %v274 = vrot.slane %v261, %v273
        %v275 = vlaneseq
        %v276 = vshrl.u32 %v275, 7
        %v277 = vsub.s32 3, %v276
        %v278 = vrot.slane %v261, %v277
        %v279 = vcombine.low %v266, %v270
        %v280 = vcombine.low %v274, %v278
        %v282 = vunpack.c.l.s4 1966171168
        %v283 = vunpack.c.0.s8 %v282
        %v284 = vlaneseq
        %v285 = vshrl.u32 %v284, 7
        %v286 = vsub.s32 %v283, %v285
        %v287 = vrot.slane %v279, %v286
        %v289 = vunpack.c.l.s4 1966171168
        %v290 = vunpack.c.0.s8 %v289
        %v291 = vlaneseq
        %v292 = vshrl.u32 %v291, 7
        %v293 = vsub.s32 %v290, %v292
        %v294 = vrot.slane %v280, %v293
        %v295 = vcombine.low %v287, %v294
        %v297 = vunpack.c.l.s4 1966171168
        %v298 = vunpack.c.0.s8 %v297
        %v299 = vlaneseq
        %v300 = vshrl.u32 %v299, 7
        %v301 = vsub.s32 %v298, %v300
        %v302 = vrot.slane %v295, %v301
        %303 = vset.pattern.permute.xlu0 0
        %304 = vperm.xlu0 %303, %v302
        %v305 = vpop.permute.xlu0 %304
        %v306 = vlaneseq
        %v307 = vshrl.u32 %v306, 7
        %v308 = vsub.s32 %v229, %v307
        %v309 = vrot.slane %v305, %v308
        %v311 = vunpack.c.l.s4 1966171168
        %v312 = vunpack.c.0.s8 %v311
        %v313 = vlaneseq
        %v314 = vshrl.u32 %v313, 7
        %v315 = vsub.s32 %v312, %v314
        %v316 = vrot.slane %v309, %v315
        %v318 = vunpack.c.l.s4 1966171168
        %v319 = vunpack.c.0.s8 %v318
        %v320 = vlaneseq
        %v321 = vshrl.u32 %v320, 7
        %v322 = vsub.s32 %v319, %v321
        %v323 = vrot.slane %v316, %v322
        %v325 = vadd.f32 %v252, %v323
        %326 = vst.msk [vmem:[#allocation6] sm:$0x1] %vm250, %v325
        // Predicated region
        $region33: #{tpu_custom_call.1} parent=23 // pred_check
          %p327 = pneg %p72
        $region34: #{tpu_custom_call.1} parent=23 // pred_check_branch
          %329 = sbr.rel (%p327) target = $region36
        $region35: #{tpu_custom_call.1} parent=23 // pred_region
          %s331 = ssub.s32 16, 16
          %332 = vsyncadd [#allocation4], %s331
          %s334 = sshll.u32 [#allocation5], 4
          %s335 = int_to_ptr.vmem [resolvable:$true] %s334
          %337 = dma.vmem_to_hbm [thread:$0]  %s335, 16, %s1, [#allocation4]
        $region36: #{tpu_custom_call.1} parent=23 // pred_fallthru
          _
        // Predicated region
        $region37: #{tpu_custom_call.1} parent=23 // pred_check
          %p338 = pneg %p93
        $region38: #{tpu_custom_call.1} parent=23 // pred_check_branch
          %340 = sbr.rel (%p338) target = $region40
        $region39: #{tpu_custom_call.1} parent=23 // pred_region
          %s342 = ssub.s32 16, 16
          %343 = vsyncadd [#allocation7], %s342
          %s345 = sshll.u32 [#allocation6], 4
          %s346 = int_to_ptr.vmem [resolvable:$true] %s345
          %348 = dma.vmem_to_hbm [thread:$0]  %s346, 16, %s2, [#allocation7]
        $region40: #{tpu_custom_call.1} parent=23 // pred_fallthru
          _
        // Predicated region
        $region41: #{tpu_custom_call.1} parent=23 // pred_check
          %p349 = pneg %p72
        $region42: #{tpu_custom_call.1} parent=23 // pred_check_branch
          %351 = sbr.rel (%p349) target = $region44
        $region43: #{tpu_custom_call.1} parent=23 // pred_region
          %352 = dma.done [#allocation4], 16
        $region44: #{tpu_custom_call.1} parent=23 // pred_fallthru
          _
        // Predicated region
        $region45: #{tpu_custom_call.1} parent=23 // pred_check
          %p353 = pneg %p93
        $region46: #{tpu_custom_call.1} parent=23 // pred_check_branch
          %355 = sbr.rel (%p353) target = $region48
        $region47: #{tpu_custom_call.1} parent=23 // pred_region
          %356 = dma.done [#allocation7], 16
        $region48: #{tpu_custom_call.1} parent=23 // pred_fallthru
          _
      $region24: #{tpu_custom_call.1} parent=5 // pred_fallthru
        _
      %p357 = scmp.le.s32.totalorder 2, %s14
      // Predicated region
      $region49: #{tpu_custom_call.1} parent=5 // pred_check
        %p358 = pneg %p357
      $region50: #{tpu_custom_call.1} parent=5 // pred_check_branch
        %360 = sbr.rel (%p358) target = $region52
      $region51: #{tpu_custom_call.1} parent=5 // pred_region
        %s361 = ssub.s32 %s14, 2
      $region52: #{tpu_custom_call.1} parent=5 // pred_fallthru
        _
    $region6: #{tpu_custom_call.1} parent=1 // loop_footer
      %s18 = sadd.s32 1, %s14
    $region7: #{tpu_custom_call.1} parent=1 // loop_footer_branch
      %13 = sbr.rel target = $region3
    $region8: #{tpu_custom_call.1} parent=1 // loop_exit
      _
    %362 = vsyncpa [#allocation3], 1
    %s363 = scalar_lea.sflag [#allocation3], 1
    %364 = vsyncpa %s363, 1
    %365 = vsyncpa [#allocation4], 1
    %s366 = scalar_lea.sflag [#allocation4], 1
    %367 = vsyncpa %s366, 1
    %368 = vsyncpa [#allocation7], 1

</llo_original>
